<compile_context>
chip_gen: v7x
topology: tpu7x:2x2x1
jax: 0.10.0
libtpu: 0.0.40
codegen_flags: <defaults>
</compile_context>

<pallas_src>
import functools

import jax
import jax.numpy as jnp
from jax.experimental import pallas as pl
from jax.experimental.pallas import tpu as pltpu


def _attn_dropout_kernel(q_ref, k_ref, v_ref, u_ref, o_ref, *, scale, dropout_p, lk):
    q = q_ref[0]          # (Lq, D), native dtype
    k = k_ref[0]          # (Lk_pad, D), native dtype
    v = v_ref[0]          # (Lk_pad, D), native dtype

    if scale is not None:
        # torch: qk.div(1/scale_factor) == qk * scale_factor; fold into q (smaller tensor).
        q = q * jnp.asarray(scale, dtype=q.dtype)

    # scores = q @ k^T -> (Lq, Lk_pad), f32 accumulation on the MXU.
    qk = jax.lax.dot_general(
        q, k, (((1,), (1,)), ((), ())), preferred_element_type=jnp.float32
    )

    # Mask padded key columns so the softmax only sees the real Lk keys.
    lk_pad = qk.shape[-1]
    if lk_pad != lk:
        col = jax.lax.broadcasted_iota(jnp.int32, qk.shape, 1)
        qk = jnp.where(col < lk, qk, jnp.float32(-1e30))

    # Numerically-stable softmax over keys (f32).
    m = jnp.max(qk, axis=-1, keepdims=True)
    e = jnp.exp(qk - m)
    p = e / jnp.sum(e, axis=-1, keepdims=True)

    if dropout_p > 0.0:
        # TODO(synk): RNG stream cannot bit-match torch's dropout mask; the semantics
        # (drop with prob p, rescale survivors by 1/(1-p)) are reproduced exactly.
        keep = u_ref[0] >= jnp.float32(dropout_p)
        p = jnp.where(keep, p * jnp.float32(1.0 / (1.0 - dropout_p)), jnp.float32(0.0))

    # output = p @ value -> (Lq, D). Cast p to value dtype so bf16 inputs stay on the
    # bf16 MXU path; padded columns of p are zero so padded value rows don't contribute.
    out = jnp.dot(p.astype(v.dtype), v, preferred_element_type=jnp.float32)
    o_ref[0] = out.astype(o_ref.dtype)


def sdpa_with_dropout(query, key, value, scale_factor=None, dropout_p=0.1, rng_key=None):
    B, Lq, D = query.shape
    _, Lk, _ = key.shape
    dropout_p = float(dropout_p)
    scale = None if scale_factor is None else float(scale_factor)

    # Pad Lk up to a multiple of 128 so the (Lq, Lk) score tile is lane-dense.
    lk_pad = ((Lk + 127) // 128) * 128
    if lk_pad != Lk:
        pad = lk_pad - Lk
        key = jnp.pad(key, ((0, 0), (0, pad), (0, 0)))
        value = jnp.pad(value, ((0, 0), (0, pad), (0, 0)))

    # Dropout randomness generated outside the kernel (works on TPU and in interpret mode).
    if dropout_p > 0.0:
        if rng_key is None:
            rng_key = jax.random.PRNGKey(0)
        u = jax.random.uniform(rng_key, (B, Lq, lk_pad), dtype=jnp.float32)
    else:
        u = jnp.ones((B, Lq, lk_pad), dtype=jnp.float32)  # unused by the kernel

    kernel = functools.partial(
        _attn_dropout_kernel, scale=scale, dropout_p=dropout_p, lk=Lk
    )

    flops = 4 * B * Lq * lk_pad * D  # two matmuls
    bytes_accessed = int(
        query.nbytes + key.nbytes + value.nbytes + u.nbytes
        + B * Lq * D * query.dtype.itemsize
    )
    cost = pl.CostEstimate(
        flops=flops, transcendentals=B * Lq * lk_pad, bytes_accessed=bytes_accessed
    )

    return pl.pallas_call(
        kernel,
        out_shape=jax.ShapeDtypeStruct((B, Lq, D), query.dtype),
        grid=(B,),
        in_specs=[
            pl.BlockSpec((1, Lq, D), lambda b: (b, 0, 0)),
            pl.BlockSpec((1, lk_pad, D), lambda b: (b, 0, 0)),
            pl.BlockSpec((1, lk_pad, D), lambda b: (b, 0, 0)),
            pl.BlockSpec((1, Lq, lk_pad), lambda b: (b, 0, 0)),
        ],
        out_specs=pl.BlockSpec((1, Lq, D), lambda b: (b, 0, 0)),
        compiler_params=pltpu.CompilerParams(
            dimension_semantics=("parallel",),  # batch axis is independent -> v7x megacore
        ),
        cost_estimate=cost,
    )(query, key, value, u)


def _reference_no_dropout(query, key, value, scale_factor=None):
    qk = jnp.einsum("bqd,bkd->bqk", query, key).astype(jnp.float32)
    if scale_factor is not None:
        qk = qk * jnp.float32(scale_factor)
    p = jax.nn.softmax(qk, axis=-1)
    return jnp.einsum("bqk,bkd->bqd", p, value.astype(jnp.float32)).astype(query.dtype)


if __name__ == "__main__":
    # Shapes from the PyTorch script: query (1,1,128), key/value (1,3,128)
    rng = jax.random.PRNGKey(0)
    kq, kk, kv, kd = jax.random.split(rng, 4)
    query = jax.random.normal(kq, (1, 1, 128), dtype=jnp.float32)
    key = jax.random.normal(kk, (1, 3, 128), dtype=jnp.float32)
    value = jax.random.normal(kv, (1, 3, 128), dtype=jnp.float32)

    # Sanity check without dropout against a pure-JAX reference.
    out_nodrop = sdpa_with_dropout(query, key, value, scale_factor=None, dropout_p=0.0)
    out_nodrop = jax.block_until_ready(out_nodrop)
    ref = _reference_no_dropout(query, key, value, scale_factor=None)
    assert jnp.allclose(out_nodrop, ref, rtol=2e-2, atol=2e-2)

    # Full forward pass matching the module defaults (dropout_p=0.1, training semantics).
    out = sdpa_with_dropout(
        query, key, value, scale_factor=None, dropout_p=0.1, rng_key=kd
    )
    out = jax.block_until_ready(out)
    assert out.shape == (1, 1, 128) and out.dtype == jnp.float32
    assert bool(jnp.all(jnp.isfinite(out)))
    print("KERNEL_OK")
</pallas_src>

<mosaic_0001>
module attributes {stable_mosaic.version = 11 : i64} {
  func.func @_attn_dropout_kernel(%arg0: i32, %arg1: memref<1x1x128xf32, #tpu.memory_space<vmem>>, %arg2: memref<1x128x128xf32, #tpu.memory_space<vmem>>, %arg3: memref<1x128x128xf32, #tpu.memory_space<vmem>>, %arg4: memref<1x1x128xf32, #tpu.memory_space<vmem>>, %arg5: memref<1x1x128xf32, #tpu.memory_space<vmem>>) attributes {dimension_semantics = [#tpu.dimension_semantics<parallel>], iteration_bounds = array<i64: 1>, scalar_prefetch = 0 : i64, scratch_operands = 0 : i64, tpu.core_type = #tpu.core_type<tc>, window_params = [{transform_indices = @transform_0, window_bounds = array<i64: 1, 1, 128>}, {transform_indices = @transform_1, window_bounds = array<i64: 1, 128, 128>}, {transform_indices = @transform_2, window_bounds = array<i64: 1, 128, 128>}, {transform_indices = @transform_3, window_bounds = array<i64: 1, 1, 128>}, {transform_indices = @transform_4, window_bounds = array<i64: 1, 1, 128>}]} {
    %c0 = arith.constant 0 : index
    %c0_0 = arith.constant 0 : index
    %c0_1 = arith.constant 0 : index
    %0 = vector.load %arg1[%c0, %c0_0, %c0_1] : memref<1x1x128xf32, #tpu.memory_space<vmem>>, vector<1x1x128xf32>
    %1 = vector.shape_cast %0 : vector<1x1x128xf32> to vector<1x128xf32>
    %c0_2 = arith.constant 0 : index
    %c0_3 = arith.constant 0 : index
    %c0_4 = arith.constant 0 : index
    %2 = vector.load %arg2[%c0_2, %c0_3, %c0_4] : memref<1x128x128xf32, #tpu.memory_space<vmem>>, vector<1x128x128xf32>
    %3 = vector.shape_cast %2 : vector<1x128x128xf32> to vector<128x128xf32>
    %c0_5 = arith.constant 0 : index
    %c0_6 = arith.constant 0 : index
    %c0_7 = arith.constant 0 : index
    %4 = vector.load %arg3[%c0_5, %c0_6, %c0_7] : memref<1x128x128xf32, #tpu.memory_space<vmem>>, vector<1x128x128xf32>
    %5 = vector.shape_cast %4 : vector<1x128x128xf32> to vector<128x128xf32>
    %cst = arith.constant dense<0.000000e+00> : vector<1x128xf32>
    %6 = tpu.matmul %1, %3, %cst {dimension_numbers = #tpu.dot_dimension_numbers<[1], [1], [0], [0], [0, 0, 1, 0], [], []>} : vector<1x128xf32>, vector<128x128xf32>, vector<1x128xf32> -> vector<1x128xf32>
    %7 = tpu.iota {dimensions = array<i32: 1>} : vector<1x128xi32>
    %c3_i32 = arith.constant 3 : i32
    %8 = vector.broadcast %c3_i32 : i32 to vector<1x128xi32>
    %9 = arith.cmpi slt, %7, %8 : vector<1x128xi32>
    %cst_8 = arith.constant -1.000000e+30 : f32
    %10 = vector.broadcast %cst_8 : f32 to vector<1x128xf32>
    %11 = arith.select %9, %6, %10 : vector<1x128xi1>, vector<1x128xf32>
    %cst_9 = arith.constant dense<0xFF800000> : vector<1xf32>
    %12 = vector.multi_reduction <maximumf>, %11, %cst_9 [1] : vector<1x128xf32> to vector<1xf32>
    %13 = vector.shape_cast %12 : vector<1xf32> to vector<1x1xf32>
    %14 = vector.broadcast %13 : vector<1x1xf32> to vector<1x128xf32>
    %15 = arith.subf %11, %14 : vector<1x128xf32>
    %16 = math.exp %15 : vector<1x128xf32>
    %cst_10 = arith.constant dense<0.000000e+00> : vector<1xf32>
    %17 = vector.multi_reduction <add>, %16, %cst_10 [1] : vector<1x128xf32> to vector<1xf32>
    %18 = vector.shape_cast %17 : vector<1xf32> to vector<1x1xf32>
    %19 = vector.broadcast %18 : vector<1x1xf32> to vector<1x128xf32>
    %20 = arith.divf %16, %19 : vector<1x128xf32>
    %cst_11 = arith.constant dense<0.000000e+00> : vector<1x128xf32>
    %21 = tpu.matmul %20, %5, %cst_11 {dimension_numbers = #tpu.dot_dimension_numbers<[1], [0], [0], [1], [0, 0, 1, 1], [], []>} : vector<1x128xf32>, vector<128x128xf32>, vector<1x128xf32> -> vector<1x128xf32>
    %c0_12 = arith.constant 0 : index
    %c0_13 = arith.constant 0 : index
    %c0_14 = arith.constant 0 : index
    %22 = vector.load %arg5[%c0_12, %c0_13, %c0_14] : memref<1x1x128xf32, #tpu.memory_space<vmem>>, vector<1x1x128xf32>
    %23 = vector.shape_cast %22 : vector<1x1x128xf32> to vector<1x128xf32>
    %24 = vector.shape_cast %21 : vector<1x128xf32> to vector<1x1x128xf32>
    tpu.vector_store %arg5[%c0_12, %c0_13, %c0_14], %24 {strides = array<i32>} : memref<1x1x128xf32, #tpu.memory_space<vmem>>, vector<1x1x128xf32>,
    return
  }
  func.func @transform_0(%arg0: i32) -> (i32, i32, i32) {
    %c0_i32 = arith.constant 0 : i32
    %c0_i32_0 = arith.constant 0 : i32
    %c0_i32_1 = arith.constant 0 : i32
    return %arg0, %c0_i32, %c0_i32_0 : i32, i32, i32
  }
  func.func @transform_1(%arg0: i32) -> (i32, i32, i32) {
    %c0_i32 = arith.constant 0 : i32
    %c0_i32_0 = arith.constant 0 : i32
    %c0_i32_1 = arith.constant 0 : i32
    return %arg0, %c0_i32, %c0_i32_0 : i32, i32, i32
  }
  func.func @transform_2(%arg0: i32) -> (i32, i32, i32) {
    %c0_i32 = arith.constant 0 : i32
    %c0_i32_0 = arith.constant 0 : i32
    %c0_i32_1 = arith.constant 0 : i32
    return %arg0, %c0_i32, %c0_i32_0 : i32, i32, i32
  }
  func.func @transform_3(%arg0: i32) -> (i32, i32, i32) {
    %c0_i32 = arith.constant 0 : i32
    %c0_i32_0 = arith.constant 0 : i32
    %c0_i32_1 = arith.constant 0 : i32
    return %arg0, %c0_i32, %c0_i32_0 : i32, i32, i32
  }
  func.func @transform_4(%arg0: i32) -> (i32, i32, i32) {
    %c0_i32 = arith.constant 0 : i32
    %c0_i32_0 = arith.constant 0 : i32
    %c0_i32_1 = arith.constant 0 : i32
    return %arg0, %c0_i32, %c0_i32_0 : i32, i32, i32
  }
}

</mosaic_0001>

<llo_original>
// kernel: tpu_custom_call.1
$region0: #{tpu_custom_call.1}
  #allocation0 [shape = 'u32[]', space=smem, size = 0x4, offset = 0x4, fixed_abs, tag = 'smem constant byte address 0x4 - core index']
  #allocation1 [shape = 'u32[144,128]{1,0:T(1,128)}', space=vmem, size = 0x12000, scoped, tag = 'internal scratch']
  %s0 = inlined_call_operand.hbm [shape: f32[1,1,128], index: 0, kind: input, shape index: {}]
  %s1 = inlined_call_operand.hbm [shape: f32[1,128,128], index: 1, kind: input, shape index: {}]
  %s2 = inlined_call_operand.hbm [shape: f32[1,128,128], index: 2, kind: input, shape index: {}]
  %s3 = inlined_call_operand.vmem [shape: f32[1,1,128], index: 3, kind: input, shape index: {}]
  %s4 = inlined_call_operand.hbm [shape: f32[1,1,128], index: 4, kind: output, shape index: {}]
  %s5 = sld [smem:[#allocation0]]
  $region38: #{tpu_custom_call.1} parent=0
    _
  %s7 = ssub.s32 1, %s5
  %s8 = scalar_select 0, %s7, %s5
  $region1: #{tpu_custom_call.1} parent=0
    #allocation2 [shape = 'u8[512]{0}', space=vmem, size = 0x400, scoped, tag = 'input window, operand 0, single buffered']
    #allocation3 [shape = 's32[1]{0}', space=sflag, size = 0x4, scoped, tag = 'scoped memory for tpu_custom_call.1']
    #allocation4 [shape = 's32[1]{0}', space=sflag, size = 0x4, scoped, tag = 'scoped memory for tpu_custom_call.1']
    #allocation5 [shape = 'u8[65536]{0}', space=vmem, size = 0x10000, scoped, tag = 'input window, operand 1, single buffered']
    #allocation6 [shape = 's32[1]{0}', space=sflag, size = 0x4, scoped, tag = 'scoped memory for tpu_custom_call.1']
    #allocation7 [shape = 'u8[65536]{0}', space=vmem, size = 0x10000, scoped, tag = 'input window, operand 2, single buffered']
    #allocation8 [shape = 'u8[512]{0}', space=vmem, size = 0x400, scoped, tag = 'output window, operand 0, single buffered']
    %9 = vsyncpa [#allocation3], 0
    %10 = vsyncpa [#allocation6], 0
    %11 = vsyncpa [#allocation4], 0
    // Predicated region
    $region2: #{tpu_custom_call.1} parent=1 // pred_check
      _
    $region3: #{tpu_custom_call.1} parent=1 // pred_check_branch
      %13 = sbr.rel (0) target = $region5
    $region4: #{tpu_custom_call.1} parent=1 // pred_region
      %s15 = ssub.s32 16, 16
      %16 = vsyncadd [#allocation3], %s15
      %s18 = sshll.u32 [#allocation2], 4
      %s19 = int_to_ptr.vmem [resolvable:$true] %s18
      %21 = dma.hbm_to_vmem [thread:$0]  %s0, 16, %s19, [#allocation3]
    $region5: #{tpu_custom_call.1} parent=1 // pred_fallthru
      _
    // Predicated region
    $region6: #{tpu_custom_call.1} parent=1 // pred_check
      _
    $region7: #{tpu_custom_call.1} parent=1 // pred_check_branch
      %23 = sbr.rel (0) target = $region9
    $region8: #{tpu_custom_call.1} parent=1 // pred_region
      %s25 = ssub.s32 2048, 2048
      %26 = vsyncadd [#allocation6], %s25
      %s27 = sshll.u32 [#allocation5], 4
      %s28 = int_to_ptr.vmem [resolvable:$true] %s27
      %33 = dma.hbm_to_vmem [thread:$0]  %s1, 2048, %s28, [#allocation6], 128, 128, 8
    $region9: #{tpu_custom_call.1} parent=1 // pred_fallthru
      _
    // Predicated region
    $region10: #{tpu_custom_call.1} parent=1 // pred_check
      _
    $region11: #{tpu_custom_call.1} parent=1 // pred_check_branch
      %35 = sbr.rel (0) target = $region13
    $region12: #{tpu_custom_call.1} parent=1 // pred_region
      %s37 = ssub.s32 2048, 2048
      %38 = vsyncadd [#allocation6], %s37
      %s39 = sshll.u32 [#allocation7], 4
      %s40 = int_to_ptr.vmem [resolvable:$true] %s39
      %45 = dma.hbm_to_vmem [thread:$0]  %s2, 2048, %s40, [#allocation6], 128, 128, 8
    $region13: #{tpu_custom_call.1} parent=1 // pred_fallthru
      _
    // Predicated region
    $region14: #{tpu_custom_call.1} parent=1 // pred_check
      _
    $region15: #{tpu_custom_call.1} parent=1 // pred_check_branch
      %47 = sbr.rel (0) target = $region17
    $region16: #{tpu_custom_call.1} parent=1 // pred_region
      _
    $region17: #{tpu_custom_call.1} parent=1 // pred_fallthru
      _
    // Predicated region
    $region18: #{tpu_custom_call.1} parent=1 // pred_check
      _
    $region19: #{tpu_custom_call.1} parent=1 // pred_check_branch
      %49 = sbr.rel (0) target = $region21
    $region20: #{tpu_custom_call.1} parent=1 // pred_region
      %50 = dma.done [#allocation3], 16
    $region21: #{tpu_custom_call.1} parent=1 // pred_fallthru
      _
    // Predicated region
    $region22: #{tpu_custom_call.1} parent=1 // pred_check
      _
    $region23: #{tpu_custom_call.1} parent=1 // pred_check_branch
      %52 = sbr.rel (0) target = $region25
    $region24: #{tpu_custom_call.1} parent=1 // pred_region
      %53 = dma.done [#allocation6], 2048
    $region25: #{tpu_custom_call.1} parent=1 // pred_fallthru
      _
    // Predicated region
    $region26: #{tpu_custom_call.1} parent=1 // pred_check
      _
    $region27: #{tpu_custom_call.1} parent=1 // pred_check_branch
      %55 = sbr.rel (0) target = $region29
    $region28: #{tpu_custom_call.1} parent=1 // pred_region
      %56 = dma.done [#allocation6], 2048
    $region29: #{tpu_custom_call.1} parent=1 // pred_fallthru
      _
    %v57 = vld [vmem:[#allocation2] sm:$0x1]
    %v58 = vld [vmem:[#allocation5] sm:$0xff]
    %v59 = vld [vmem:[#allocation5 + $0x8] sm:$0xff]
    %v60 = vld [vmem:[#allocation5 + $0x10] sm:$0xff]
    %v61 = vld [vmem:[#allocation5 + $0x18] sm:$0xff]
    %v62 = vld [vmem:[#allocation5 + $0x20] sm:$0xff]
    %v63 = vld [vmem:[#allocation5 + $0x28] sm:$0xff]
    %v64 = vld [vmem:[#allocation5 + $0x30] sm:$0xff]
    %v65 = vld [vmem:[#allocation5 + $0x38] sm:$0xff]
    %v66 = vld [vmem:[#allocation5 + $0x40] sm:$0xff]
    %v67 = vld [vmem:[#allocation5 + $0x48] sm:$0xff]
    %v68 = vld [vmem:[#allocation5 + $0x50] sm:$0xff]
    %v69 = vld [vmem:[#allocation5 + $0x58] sm:$0xff]
    %v70 = vld [vmem:[#allocation5 + $0x60] sm:$0xff]
    %v71 = vld [vmem:[#allocation5 + $0x68] sm:$0xff]
    %v72 = vld [vmem:[#allocation5 + $0x70] sm:$0xff]
    %v73 = vld [vmem:[#allocation5 + $0x78] sm:$0xff]
    %v74 = vld [vmem:[#allocation7] sm:$0xff]
    %v75 = vld [vmem:[#allocation7 + $0x8] sm:$0xff]
    %v76 = vld [vmem:[#allocation7 + $0x10] sm:$0xff]
    %v77 = vld [vmem:[#allocation7 + $0x18] sm:$0xff]
    %v78 = vld [vmem:[#allocation7 + $0x20] sm:$0xff]
    %v79 = vld [vmem:[#allocation7 + $0x28] sm:$0xff]
    %v80 = vld [vmem:[#allocation7 + $0x30] sm:$0xff]
    %v81 = vld [vmem:[#allocation7 + $0x38] sm:$0xff]
    %v82 = vld [vmem:[#allocation7 + $0x40] sm:$0xff]
    %v83 = vld [vmem:[#allocation7 + $0x48] sm:$0xff]
    %v84 = vld [vmem:[#allocation7 + $0x50] sm:$0xff]
    %v85 = vld [vmem:[#allocation7 + $0x58] sm:$0xff]
    %v86 = vld [vmem:[#allocation7 + $0x60] sm:$0xff]
    %v87 = vld [vmem:[#allocation7 + $0x68] sm:$0xff]
    %v88 = vld [vmem:[#allocation7 + $0x70] sm:$0xff]
    %v89 = vld [vmem:[#allocation7 + $0x78] sm:$0xff]
    %90 = vmatprep.subr.mxu0 0.0
    %91 = vmatpush1.xpose.msra.mxu0 %v58
    %92 = vmatprep.subr.mxu0 0.0
    %93 = vmatpush1.xpose.msra.mxu0 %v59
    %94 = vmatprep.subr.mxu0 0.0
    %95 = vmatpush1.xpose.msra.mxu0 %v60
    %96 = vmatprep.subr.mxu0 0.0
    %97 = vmatpush1.xpose.msra.mxu0 %v61
    %98 = vmatprep.subr.mxu0 0.0
    %99 = vmatpush1.xpose.msra.mxu0 %v62
    %100 = vmatprep.subr.mxu0 0.0
    %101 = vmatpush1.xpose.msra.mxu0 %v63
    %102 = vmatprep.subr.mxu0 0.0
    %103 = vmatpush1.xpose.msra.mxu0 %v64
    %104 = vmatprep.subr.mxu0 0.0
    %105 = vmatpush1.xpose.msra.mxu0 %v65
    %106 = vmatprep.subr.mxu0 0.0
    %107 = vmatpush1.xpose.msra.mxu0 %v66
    %108 = vmatprep.subr.mxu0 0.0
    %109 = vmatpush1.xpose.msra.mxu0 %v67
    %110 = vmatprep.subr.mxu0 0.0
    %111 = vmatpush1.xpose.msra.mxu0 %v68
    %112 = vmatprep.subr.mxu0 0.0
    %113 = vmatpush1.xpose.msra.mxu0 %v69
    %114 = vmatprep.subr.mxu0 0.0
    %115 = vmatpush1.xpose.msra.mxu0 %v70
    %116 = vmatprep.subr.mxu0 0.0
    %117 = vmatpush1.xpose.msra.mxu0 %v71
    %118 = vmatprep.subr.mxu0 0.0
    %119 = vmatpush1.xpose.msra.mxu0 %v72
    %120 = vmatprep.subr.mxu0 0.0
    %121 = vmatpush1.xpose.msra.mxu0 %v73
    %122 = vmatprep.subr.mxu0 0.0
    %123 = vmatpush1.xpose.msra.mxu0 0.0
    %124 = vmatprep.subr.mxu0 0.0
    %125 = vmatpush1.xpose.msra.mxu0 0.0
    %126 = vmatprep.subr.mxu0 0.0
    %127 = vmatpush1.xpose.msra.mxu0 0.0
    %128 = vmatprep.subr.mxu0 0.0
    %129 = vmatpush1.xpose.msra.mxu0 0.0
    %130 = vmatprep.subr.mxu0 0.0
    %131 = vmatpush1.xpose.msra.mxu0 0.0
    %132 = vmatprep.subr.mxu0 0.0
    %133 = vmatpush1.xpose.msra.mxu0 0.0
    %134 = vmatprep.subr.mxu0 0.0
    %135 = vmatpush1.xpose.msra.mxu0 0.0
    %136 = vmatprep.subr.mxu0 0.0
    %137 = vmatpush1.xpose.msra.mxu0 0.0
    %138 = vmatprep.subr.mxu0 0.0
    %139 = vmatpush1.xpose.msra.mxu0 0.0
    %140 = vmatprep.subr.mxu0 0.0
    %141 = vmatpush1.xpose.msra.mxu0 0.0
    %142 = vmatprep.subr.mxu0 0.0
    %143 = vmatpush1.xpose.msra.mxu0 0.0
    %144 = vmatprep.subr.mxu0 0.0
    %145 = vmatpush1.xpose.msra.mxu0 0.0
    %146 = vmatprep.subr.mxu0 0.0
    %147 = vmatpush1.xpose.msra.mxu0 0.0
    %148 = vmatprep.subr.mxu0 0.0
    %149 = vmatpush1.xpose.msra.mxu0 0.0
    %150 = vmatprep.subr.mxu0 0.0
    %151 = vmatpush1.xpose.msra.mxu0 0.0
    %152 = vmatprep.subr.mxu0 0.0
    %153 = vmatpush1.xpose.msra.mxu0 0.0
    %154 = vmatprep.mubr.f32.mxu0 0.0
    %155 = vmatmul.mubr.f32.gmra.mrb[0].mxu0 %v57
    %v156 = vpop.f32.mrb[0].mxu0
    %v157 = vadd.f32 0.0, %v156
    %v158 = vpop.f32.mrb[0].mxu0
    %159 = vdwg.mxu0
    %v160 = vlaneseq
    %v161 = vand.u32 %v160, 127
    %vm162 = vcmp.lt.s32.totalorder %v161, 3
    %v163 = vsel %vm162, %v157, -1e+30
    %vm164 = vcmask 1040384
    %v165 = vsel %vm164, %v163, -inf
    %166 = vmax.xlane.f32.xlu0 %v165
    %v167 = vpop.xlane.xlu0 %166
    %v168 = vsub.f32 %v163, %v167
    %v169 = vmul.f32 %v168, 1.442695
    %v170 = vpow.pop %v169
    %v171 = vsel %vm164, %v170, 0.0
    %172 = vadd.xlane.f32.xlu0 %v171
    %v173 = vpop.xlane.xlu0 %172
    %v174 = vrcp.pop %v173
    %v175 = vmul.f32 %v170, %v174
    %176 = vmatprep.subr.mxu0 0.0
    %177 = vmatpush1.msra.mxu0 %v74
    %178 = vmatprep.subr.mxu0 0.0
    %179 = vmatpush1.msra.mxu0 %v75
    %180 = vmatprep.subr.mxu0 0.0
    %181 = vmatpush1.msra.mxu0 %v76
    %182 = vmatprep.subr.mxu0 0.0
    %183 = vmatpush1.msra.mxu0 %v77
    %184 = vmatprep.subr.mxu0 0.0
    %185 = vmatpush1.msra.mxu0 %v78
    %186 = vmatprep.subr.mxu0 0.0
    %187 = vmatpush1.msra.mxu0 %v79
    %188 = vmatprep.subr.mxu0 0.0
    %189 = vmatpush1.msra.mxu0 %v80
    %190 = vmatprep.subr.mxu0 0.0
    %191 = vmatpush1.msra.mxu0 %v81
    %192 = vmatprep.subr.mxu0 0.0
    %193 = vmatpush1.msra.mxu0 %v82
    %194 = vmatprep.subr.mxu0 0.0
    %195 = vmatpush1.msra.mxu0 %v83
    %196 = vmatprep.subr.mxu0 0.0
    %197 = vmatpush1.msra.mxu0 %v84
    %198 = vmatprep.subr.mxu0 0.0
    %199 = vmatpush1.msra.mxu0 %v85
    %200 = vmatprep.subr.mxu0 0.0
    %201 = vmatpush1.msra.mxu0 %v86
    %202 = vmatprep.subr.mxu0 0.0
    %203 = vmatpush1.msra.mxu0 %v87
    %204 = vmatprep.subr.mxu0 0.0
    %205 = vmatpush1.msra.mxu0 %v88
    %206 = vmatprep.subr.mxu0 0.0
    %207 = vmatpush1.msra.mxu0 %v89
    %208 = vmatprep.subr.mxu0 0.0
    %209 = vmatpush1.msra.mxu0 0.0
    %210 = vmatprep.subr.mxu0 0.0
    %211 = vmatpush1.msra.mxu0 0.0
    %212 = vmatprep.subr.mxu0 0.0
    %213 = vmatpush1.msra.mxu0 0.0
    %214 = vmatprep.subr.mxu0 0.0
    %215 = vmatpush1.msra.mxu0 0.0
    %216 = vmatprep.subr.mxu0 0.0
    %217 = vmatpush1.msra.mxu0 0.0
    %218 = vmatprep.subr.mxu0 0.0
    %219 = vmatpush1.msra.mxu0 0.0
    %220 = vmatprep.subr.mxu0 0.0
    %221 = vmatpush1.msra.mxu0 0.0
    %222 = vmatprep.subr.mxu0 0.0
    %223 = vmatpush1.msra.mxu0 0.0
    %224 = vmatprep.subr.mxu0 0.0
    %225 = vmatpush1.msra.mxu0 0.0
    %226 = vmatprep.subr.mxu0 0.0
    %227 = vmatpush1.msra.mxu0 0.0
    %228 = vmatprep.subr.mxu0 0.0
    %229 = vmatpush1.msra.mxu0 0.0
    %230 = vmatprep.subr.mxu0 0.0
    %231 = vmatpush1.msra.mxu0 0.0
    %232 = vmatprep.subr.mxu0 0.0
    %233 = vmatpush1.msra.mxu0 0.0
    %234 = vmatprep.subr.mxu0 0.0
    %235 = vmatpush1.msra.mxu0 0.0
    %236 = vmatprep.subr.mxu0 0.0
    %237 = vmatpush1.msra.mxu0 0.0
    %238 = vmatprep.subr.mxu0 0.0
    %239 = vmatpush1.msra.mxu0 0.0
    %240 = vmatprep.mubr.f32.mxu0 0.0
    %241 = vmatmul.mubr.f32.gmra.mrb[0].mxu0 %v175
    %v242 = vpop.f32.mrb[0].mxu0
    %v243 = vadd.f32 0.0, %v242
    %v244 = vpop.f32.mrb[0].mxu0
    %245 = vdwg.mxu0
    %246 = vst [vmem:[#allocation8] sm:$0x1] %v243
    // Predicated region
    $region30: #{tpu_custom_call.1} parent=1 // pred_check
      _
    $region31: #{tpu_custom_call.1} parent=1 // pred_check_branch
      %248 = sbr.rel (0) target = $region33
    $region32: #{tpu_custom_call.1} parent=1 // pred_region
      %s250 = ssub.s32 16, 16
      %251 = vsyncadd [#allocation4], %s250
      %s253 = sshll.u32 [#allocation8], 4
      %s254 = int_to_ptr.vmem [resolvable:$true] %s253
      %256 = dma.vmem_to_hbm [thread:$0]  %s254, 16, %s4, [#allocation4]
    $region33: #{tpu_custom_call.1} parent=1 // pred_fallthru
      _
    // Predicated region
    $region34: #{tpu_custom_call.1} parent=1 // pred_check
      _
    $region35: #{tpu_custom_call.1} parent=1 // pred_check_branch
      %258 = sbr.rel (0) target = $region37
    $region36: #{tpu_custom_call.1} parent=1 // pred_region
      %259 = dma.done [#allocation4], 16
    $region37: #{tpu_custom_call.1} parent=1 // pred_fallthru
      _
    %260 = vsyncpa [#allocation3], 1
    %261 = vsyncpa [#allocation6], 1
    %262 = vsyncpa [#allocation4], 1

</llo_original>
